<compile_context>
chip_gen: v7x
topology: tpu7x:2x2x1
jax: 0.10.0
libtpu: 0.0.40
codegen_flags: <defaults>
</compile_context>

<pallas_src>
import functools

import jax
import jax.numpy as jnp
from jax.experimental import pallas as pl
from jax.experimental.pallas import tpu as pltpu  # noqa: F401  (needed only when tiling larger configs)

_LANE = 128


def _round_up(x, m):
    return (x + m - 1) // m * m


def _write_head_kernel(ctrl_ref, mem_ref, w_ref, b_ref, newmem_ref, ww_ref,
                       *, n_slots, mem_dim):
    # ctrl_ref:   (B, C)        controller output
    # mem_ref:    (B, N, M)     memory (aliased with newmem_ref's HBM buffer)
    # w_ref:      (C, 128*k)    fused [attention | erase | add] weight
    # b_ref:      (1, 128*k)    fused bias
    # newmem_ref: (B, N, M)     updated memory (output)
    # ww_ref:     (B, N)        write weights (output)
    ctrl = ctrl_ref[...].astype(jnp.float32)                      # (B, C)

    # One fused MXU matmul for all live heads - a single 128-lane column tile.
    # For larger C/N/M, bf16 inputs (with f32 accumulate) halve weight traffic
    # and run at native MXU rate on v5e, v6e and v7x alike; kept f32 here for
    # exactness at these tiny sizes.
    fused = jnp.dot(ctrl, w_ref[...], preferred_element_type=jnp.float32)
    fused = fused + b_ref[...]                                    # (B, 128*k)

    att = fused[:, :n_slots]                                      # (B, N)
    erase_l = fused[:, n_slots:n_slots + mem_dim]                 # (B, M)
    add_l = fused[:, n_slots + mem_dim:n_slots + 2 * mem_dim]     # (B, M)

    # Numerically-stable softmax over memory slots; the normalization uses the
    # EUP approx reciprocal (otherwise-idle slot) instead of a VPU divide.
    att = att - jnp.max(att, axis=1, keepdims=True)
    p = jnp.exp(att)
    ww = p * pl.reciprocal(jnp.sum(p, axis=1, keepdims=True), approx=True)

    erase = pl.reciprocal(1.0 + jnp.exp(-erase_l), approx=True)   # sigmoid
    add = jnp.tanh(add_l)

    ww_ref[...] = ww.astype(ww_ref.dtype)

    # Vectorized rank-1 update over the whole batch:
    #   M <- M * (1 - ww e^T) + ww a^T
    # One broadcast expression, one full-block store (no per-row unroll,
    # no masked partial stores).
    mem = mem_ref[...].astype(jnp.float32)                        # (B, N, M)
    w_col = ww[:, :, None]                                        # (B, N, 1)
    newmem_ref[...] = (mem * (1.0 - w_col * erase[:, None, :])
                       + w_col * add[:, None, :]).astype(newmem_ref.dtype)


def pack_write_head_params(attn_w, attn_b, erase_w, erase_b, add_w, add_b):
    """Pack the three live heads into one lane-padded fused weight / bias.

    Call ONCE outside the per-timestep loop; the packed params are reused by
    every `write_head_forward` call (the packing is pure XLA and is *not* in
    the kernel's hot path).

    *_w / *_b are PyTorch nn.Linear params, weight shape (out_features, in_features).
    Returns (w_fused (C, 128*k), b_fused (1, 128*k)).
    """
    n_slots, _ = attn_w.shape
    mem_dim = erase_w.shape[0]
    used = n_slots + 2 * mem_dim
    width = _round_up(used, _LANE)

    w_cat = jnp.concatenate(
        [attn_w.T, erase_w.T, add_w.T], axis=1).astype(jnp.float32)   # (C, used)
    b_cat = jnp.concatenate(
        [attn_b, erase_b, add_b]).astype(jnp.float32)[None, :]        # (1, used)

    w_fused = jnp.pad(w_cat, ((0, 0), (0, width - used)))
    b_fused = jnp.pad(b_cat, ((0, 0), (0, width - used)))
    return w_fused, b_fused


@jax.jit
def write_head_forward(controller_output, memory, prev_weights, w_fused, b_fused):
    """Pallas forward of WriteHead.

    controller_output: (B, C) f32
    memory:            (B, N, M) f32
    prev_weights:      (B, N) f32 - unused by the module's forward (API parity)
    w_fused, b_fused:  output of pack_write_head_params (computed once)
    Returns (new_memory (B, N, M), write_weights (B, N)).
    """
    del prev_weights  # the PyTorch forward also ignores it
    B, _ = controller_output.shape
    _, N, M = memory.shape

    kernel = functools.partial(_write_head_kernel, n_slots=N, mem_dim=M)

    return pl.pallas_call(
        kernel,
        out_shape=(jax.ShapeDtypeStruct((B, N, M), memory.dtype),
                   jax.ShapeDtypeStruct((B, N), controller_output.dtype)),
        # P8: the new memory reuses the old memory's HBM buffer when the caller
        # donates it (in-place NTM memory update); XLA copies otherwise.
        input_output_aliases={1: 0},
    )(controller_output, memory, w_fused, b_fused)


def write_head_reference(controller_output, memory,
                         attn_w, attn_b, erase_w, erase_b, add_w, add_b):
    """Pure-JAX reference matching the PyTorch WriteHead.forward."""
    hp = jax.lax.Precision.HIGHEST
    att = jnp.dot(controller_output, attn_w.T, precision=hp) + attn_b
    ww = jax.nn.softmax(att, axis=1)
    erase = jax.nn.sigmoid(jnp.dot(controller_output, erase_w.T, precision=hp) + erase_b)
    add = jnp.tanh(jnp.dot(controller_output, add_w.T, precision=hp) + add_b)
    erase_m = ww[:, :, None] * erase[:, None, :]
    add_m = ww[:, :, None] * add[:, None, :]
    new_mem = memory * (1.0 - erase_m) + add_m
    return new_mem, ww


if __name__ == "__main__":
    key = jax.random.PRNGKey(0)

    B = 2
    controller_size = 32
    memory_size = 16
    memory_dim = 8

    keys = jax.random.split(key, 8)
    ctrl = jax.random.normal(keys[0], (B, controller_size), dtype=jnp.float32)
    memory = jax.random.normal(keys[1], (B, memory_size, memory_dim),
                               dtype=jnp.float32)
    prev_weights = jax.nn.softmax(
        jax.random.normal(keys[2], (B, memory_size), dtype=jnp.float32), axis=1)

    def make_linear(k, out_dim, in_dim):
        kw, kb = jax.random.split(k)
        bound = 1.0 / (in_dim ** 0.5)
        w = jax.random.uniform(kw, (out_dim, in_dim), minval=-bound,
                               maxval=bound, dtype=jnp.float32)
        b = jax.random.uniform(kb, (out_dim,), minval=-bound,
                               maxval=bound, dtype=jnp.float32)
        return w, b

    attn_w, attn_b = make_linear(keys[3], memory_size, controller_size)
    erase_w, erase_b = make_linear(keys[4], memory_dim, controller_size)
    add_w, add_b = make_linear(keys[5], memory_dim, controller_size)
    # write_key / write_strength params exist in the module but never reach
    # the returned (memory, write_weights); created only for shape parity.
    _key_w, _key_b = make_linear(keys[6], memory_dim, controller_size)
    _str_w, _str_b = make_linear(keys[7], 1, controller_size)

    # Pack the fused weight/bias ONCE (outside the hot path).
    w_fused, b_fused = pack_write_head_params(attn_w, attn_b, erase_w, erase_b,
                                              add_w, add_b)

    new_mem, ww = write_head_forward(ctrl, memory, prev_weights, w_fused, b_fused)
    new_mem = jax.block_until_ready(new_mem)
    ww = jax.block_until_ready(ww)

    ref_mem, ref_ww = write_head_reference(ctrl, memory, attn_w, attn_b,
                                           erase_w, erase_b, add_w, add_b)

    assert new_mem.shape == (B, memory_size, memory_dim)
    assert ww.shape == (B, memory_size)
    # Tolerance loosened slightly for the EUP approx reciprocals.
    assert jnp.allclose(new_mem, ref_mem, atol=2e-3, rtol=2e-3), (
        "Pallas WriteHead memory mismatch vs JAX reference")
    assert jnp.allclose(ww, ref_ww, atol=2e-3, rtol=2e-3), (
        "Pallas WriteHead write_weights mismatch vs JAX reference")
    print("KERNEL_OK")
</pallas_src>

<mosaic_0001>
module attributes {stable_mosaic.version = 11 : i64} {
  func.func @_write_head_kernel(%arg0: memref<2x32xf32, #tpu.memory_space<vmem>>, %arg1: memref<2x16x8xf32, #tpu.memory_space<vmem>>, %arg2: memref<32x128xf32, #tpu.memory_space<vmem>>, %arg3: memref<1x128xf32, #tpu.memory_space<vmem>>, %arg4: memref<2x16x8xf32, #tpu.memory_space<vmem>>, %arg5: memref<2x16xf32, #tpu.memory_space<vmem>>) attributes {dimension_semantics = [], scalar_prefetch = 0 : i64, scratch_operands = 0 : i64, tpu.core_type = #tpu.core_type<tc>} {
    %c0 = arith.constant 0 : index
    %c0_0 = arith.constant 0 : index
    %0 = vector.load %arg0[%c0, %c0_0] : memref<2x32xf32, #tpu.memory_space<vmem>>, vector<2x32xf32>
    %c0_1 = arith.constant 0 : index
    %c0_2 = arith.constant 0 : index
    %1 = vector.load %arg2[%c0_1, %c0_2] : memref<32x128xf32, #tpu.memory_space<vmem>>, vector<32x128xf32>
    %cst = arith.constant dense<0.000000e+00> : vector<2x128xf32>
    %2 = tpu.matmul %0, %1, %cst {dimension_numbers = #tpu.dot_dimension_numbers<[1], [0], [0], [1], [0, 0, 1, 1], [], []>} : vector<2x32xf32>, vector<32x128xf32>, vector<2x128xf32> -> vector<2x128xf32>
    %c0_3 = arith.constant 0 : index
    %c0_4 = arith.constant 0 : index
    %3 = vector.load %arg3[%c0_3, %c0_4] : memref<1x128xf32, #tpu.memory_space<vmem>>, vector<1x128xf32>
    %4 = vector.broadcast %3 : vector<1x128xf32> to vector<2x128xf32>
    %5 = arith.addf %2, %4 : vector<2x128xf32>
    %6 = vector.extract_strided_slice %5 {offsets = [0, 0], sizes = [2, 16], strides = [1, 1]} : vector<2x128xf32> to vector<2x16xf32>
    %7 = vector.extract_strided_slice %5 {offsets = [0, 16], sizes = [2, 8], strides = [1, 1]} : vector<2x128xf32> to vector<2x8xf32>
    %8 = vector.extract_strided_slice %5 {offsets = [0, 24], sizes = [2, 8], strides = [1, 1]} : vector<2x128xf32> to vector<2x8xf32>
    %cst_5 = arith.constant dense<0xFF800000> : vector<2xf32>
    %9 = vector.multi_reduction <maximumf>, %6, %cst_5 [1] : vector<2x16xf32> to vector<2xf32>
    %10 = vector.shape_cast %9 : vector<2xf32> to vector<2x1xf32>
    %11 = vector.broadcast %10 : vector<2x1xf32> to vector<2x16xf32>
    %12 = arith.subf %6, %11 : vector<2x16xf32>
    %13 = math.exp %12 : vector<2x16xf32>
    %cst_6 = arith.constant dense<0.000000e+00> : vector<2xf32>
    %14 = vector.multi_reduction <add>, %13, %cst_6 [1] : vector<2x16xf32> to vector<2xf32>
    %15 = vector.shape_cast %14 : vector<2xf32> to vector<2x1xf32>
    %16 = tpu.reciprocal %15 {approx = true} : vector<2x1xf32> -> vector<2x1xf32>
    %17 = vector.broadcast %16 : vector<2x1xf32> to vector<2x16xf32>
    %18 = arith.mulf %13, %17 : vector<2x16xf32>
    %cst_7 = arith.constant 0.000000e+00 : f32
    %19 = vector.broadcast %cst_7 : f32 to vector<2x8xf32>
    %20 = arith.subf %19, %7 : vector<2x8xf32>
    %21 = math.exp %20 : vector<2x8xf32>
    %cst_8 = arith.constant 1.000000e+00 : f32
    %22 = vector.broadcast %cst_8 : f32 to vector<2x8xf32>
    %23 = arith.addf %22, %21 : vector<2x8xf32>
    %24 = tpu.reciprocal %23 {approx = true} : vector<2x8xf32> -> vector<2x8xf32>
    %25 = math.tanh %8 : vector<2x8xf32>
    %c0_9 = arith.constant 0 : index
    %c0_10 = arith.constant 0 : index
    %26 = vector.load %arg5[%c0_9, %c0_10] : memref<2x16xf32, #tpu.memory_space<vmem>>, vector<2x16xf32>
    tpu.vector_store %arg5[%c0_9, %c0_10], %18 {strides = array<i32>} : memref<2x16xf32, #tpu.memory_space<vmem>>, vector<2x16xf32>,
    %c0_11 = arith.constant 0 : index
    %c0_12 = arith.constant 0 : index
    %c0_13 = arith.constant 0 : index
    %27 = vector.load %arg1[%c0_11, %c0_12, %c0_13] : memref<2x16x8xf32, #tpu.memory_space<vmem>>, vector<2x16x8xf32>
    %28 = vector.shape_cast %18 : vector<2x16xf32> to vector<2x16x1xf32>
    %29 = vector.shape_cast %24 : vector<2x8xf32> to vector<2x1x8xf32>
    %30 = vector.broadcast %28 : vector<2x16x1xf32> to vector<2x16x8xf32>
    %31 = vector.broadcast %29 : vector<2x1x8xf32> to vector<2x16x8xf32>
    %32 = arith.mulf %30, %31 : vector<2x16x8xf32>
    %cst_14 = arith.constant 1.000000e+00 : f32
    %33 = vector.broadcast %cst_14 : f32 to vector<2x16x8xf32>
    %34 = arith.subf %33, %32 : vector<2x16x8xf32>
    %35 = arith.mulf %27, %34 : vector<2x16x8xf32>
    %36 = vector.shape_cast %25 : vector<2x8xf32> to vector<2x1x8xf32>
    %37 = vector.broadcast %28 : vector<2x16x1xf32> to vector<2x16x8xf32>
    %38 = vector.broadcast %36 : vector<2x1x8xf32> to vector<2x16x8xf32>
    %39 = arith.mulf %37, %38 : vector<2x16x8xf32>
    %40 = arith.addf %35, %39 : vector<2x16x8xf32>
    %c0_15 = arith.constant 0 : index
    %c0_16 = arith.constant 0 : index
    %c0_17 = arith.constant 0 : index
    %41 = vector.load %arg4[%c0_15, %c0_16, %c0_17] : memref<2x16x8xf32, #tpu.memory_space<vmem>>, vector<2x16x8xf32>
    tpu.vector_store %arg4[%c0_15, %c0_16, %c0_17], %40 {strides = array<i32>} : memref<2x16x8xf32, #tpu.memory_space<vmem>>, vector<2x16x8xf32>,
    return
  }
}

</mosaic_0001>

<llo_original>
// kernel: write_head_forward.1
$region0: #{write_head_forward.1}
  #allocation0 [shape = 'u32[]', space=smem, size = 0x4, offset = 0x4, fixed_abs, tag = 'smem constant byte address 0x4 - core index']
  #allocation1 [shape = 'u32[144,128]{1,0:T(1,128)}', space=vmem, size = 0x12000, scoped, tag = 'internal scratch']
  %s0 = inlined_call_operand.vmem [shape: f32[2,32], index: 0, kind: input, shape index: {}]
  %s1 = inlined_call_operand.vmem [shape: f32[2,16,8], index: 1, kind: input, shape index: {}, may-alias: {1,4}]
  %s2 = inlined_call_operand.vmem [shape: f32[32,128], index: 2, kind: input, shape index: {}]
  %s3 = inlined_call_operand.vmem [shape: f32[1,128], index: 3, kind: input, shape index: {}]
  %s4 = inlined_call_operand.vmem [shape: f32[2,16,8], index: 4, kind: output, shape index: {0}, may-alias: {1,4}]
  %s5 = inlined_call_operand.hbm [shape: f32[2,16], index: 5, kind: output, shape index: {1}]
  %6 = xla_tuple %s4, %s5
  %s7 = sld [smem:[#allocation0]]
  $region34: #{write_head_forward.1} parent=0
    _
  %s9 = ssub.s32 1, %s7
  %s10 = scalar_select 0, %s9, %s7
  $region1: #{write_head_forward.1} parent=0
    #allocation2 [shape = 'u8[1024]{0}', space=vmem, size = 0x400, scoped, tag = 'output window, operand 1, single buffered']
    #allocation3 [shape = 's32[1]{0}', space=sflag, size = 0x4, scoped, tag = 'scoped memory for write_head_forward.1']
    %11 = vsyncpa [#allocation3], 0
    // Predicated region
    $region2: #{write_head_forward.1} parent=1 // pred_check
      _
    $region3: #{write_head_forward.1} parent=1 // pred_check_branch
      %13 = sbr.rel (0) target = $region5
    $region4: #{write_head_forward.1} parent=1 // pred_region
      _
    $region5: #{write_head_forward.1} parent=1 // pred_fallthru
      _
    // Predicated region
    $region6: #{write_head_forward.1} parent=1 // pred_check
      _
    $region7: #{write_head_forward.1} parent=1 // pred_check_branch
      %15 = sbr.rel (0) target = $region9
    $region8: #{write_head_forward.1} parent=1 // pred_region
      _
    $region9: #{write_head_forward.1} parent=1 // pred_fallthru
      _
    // Predicated region
    $region10: #{write_head_forward.1} parent=1 // pred_check
      _
    $region11: #{write_head_forward.1} parent=1 // pred_check_branch
      %17 = sbr.rel (0) target = $region13
    $region12: #{write_head_forward.1} parent=1 // pred_region
      _
    $region13: #{write_head_forward.1} parent=1 // pred_fallthru
      _
    // Predicated region
    $region14: #{write_head_forward.1} parent=1 // pred_check
      _
    $region15: #{write_head_forward.1} parent=1 // pred_check_branch
      %19 = sbr.rel (0) target = $region17
    $region16: #{write_head_forward.1} parent=1 // pred_region
      _
    $region17: #{write_head_forward.1} parent=1 // pred_fallthru
      _
    %v20 = vld [vmem:[%s0] sm:$0x3]
    %v21 = vld [vmem:[%s2] sm:$0xff]
    %v22 = vld [vmem:[%s2 + $0x8] sm:$0xff]
    %v23 = vld [vmem:[%s2 + $0x10] sm:$0xff]
    %v24 = vld [vmem:[%s2 + $0x18] sm:$0xff]
    %v25 = vld [vmem:[%s3] sm:$0x1]
    %v27 = vlaneseq
    %v28 = vshrl.u32 %v27, 7
    %v29 = vsub.s32 0, %v28
    %v30 = vrot.slane %v25, %v29
    %vm32 = vcmask 261120
    %v34 = vsel %vm32, %v20, 0
    %36 = vmatprep.subr.mxu0 0.0
    %37 = vmatpush1.msra.mxu0 %v21
    %38 = vmatprep.subr.mxu0 0.0
    %39 = vmatpush1.msra.mxu0 %v22
    %40 = vmatprep.subr.mxu0 0.0
    %41 = vmatpush1.msra.mxu0 %v23
    %42 = vmatprep.subr.mxu0 0.0
    %43 = vmatpush1.msra.mxu0 %v24
    %44 = vmatprep.subr.mxu0 0.0
    %45 = vmatpush1.msra.mxu0 0.0
    %46 = vmatprep.subr.mxu0 0.0
    %47 = vmatpush1.msra.mxu0 0.0
    %48 = vmatprep.subr.mxu0 0.0
    %49 = vmatpush1.msra.mxu0 0.0
    %50 = vmatprep.subr.mxu0 0.0
    %51 = vmatpush1.msra.mxu0 0.0
    %52 = vmatprep.subr.mxu0 0.0
    %53 = vmatpush1.msra.mxu0 0.0
    %54 = vmatprep.subr.mxu0 0.0
    %55 = vmatpush1.msra.mxu0 0.0
    %56 = vmatprep.subr.mxu0 0.0
    %57 = vmatpush1.msra.mxu0 0.0
    %58 = vmatprep.subr.mxu0 0.0
    %59 = vmatpush1.msra.mxu0 0.0
    %60 = vmatprep.subr.mxu0 0.0
    %61 = vmatpush1.msra.mxu0 0.0
    %62 = vmatprep.subr.mxu0 0.0
    %63 = vmatpush1.msra.mxu0 0.0
    %64 = vmatprep.subr.mxu0 0.0
    %65 = vmatpush1.msra.mxu0 0.0
    %66 = vmatprep.subr.mxu0 0.0
    %67 = vmatpush1.msra.mxu0 0.0
    %68 = vmatprep.subr.mxu0 0.0
    %69 = vmatpush1.msra.mxu0 0.0
    %70 = vmatprep.subr.mxu0 0.0
    %71 = vmatpush1.msra.mxu0 0.0
    %72 = vmatprep.subr.mxu0 0.0
    %73 = vmatpush1.msra.mxu0 0.0
    %74 = vmatprep.subr.mxu0 0.0
    %75 = vmatpush1.msra.mxu0 0.0
    %76 = vmatprep.subr.mxu0 0.0
    %77 = vmatpush1.msra.mxu0 0.0
    %78 = vmatprep.subr.mxu0 0.0
    %79 = vmatpush1.msra.mxu0 0.0
    %80 = vmatprep.subr.mxu0 0.0
    %81 = vmatpush1.msra.mxu0 0.0
    %82 = vmatprep.subr.mxu0 0.0
    %83 = vmatpush1.msra.mxu0 0.0
    %84 = vmatprep.subr.mxu0 0.0
    %85 = vmatpush1.msra.mxu0 0.0
    %86 = vmatprep.subr.mxu0 0.0
    %87 = vmatpush1.msra.mxu0 0.0
    %88 = vmatprep.subr.mxu0 0.0
    %89 = vmatpush1.msra.mxu0 0.0
    %90 = vmatprep.subr.mxu0 0.0
    %91 = vmatpush1.msra.mxu0 0.0
    %92 = vmatprep.subr.mxu0 0.0
    %93 = vmatpush1.msra.mxu0 0.0
    %94 = vmatprep.subr.mxu0 0.0
    %95 = vmatpush1.msra.mxu0 0.0
    %96 = vmatprep.subr.mxu0 0.0
    %97 = vmatpush1.msra.mxu0 0.0
    %98 = vmatprep.subr.mxu0 0.0
    %99 = vmatpush1.msra.mxu0 0.0
    %100 = vmatprep.mubr.f32.mxu0 0.0
    %101 = vmatmul.mubr.f32.gmra.mrb[0].mxu0 %v34
    %v102 = vpop.f32.mrb[0].mxu0
    %v103 = vadd.f32 %v30, %v102
    %v104 = vpop.f32.mrb[0].mxu0
    %105 = vdwg.mxu0
    %vm106 = vcmask 123904
    %v107 = vsel %vm106, %v103, -inf
    %108 = vmax.xlane.f32.xlu0 %v107
    %v109 = vpop.xlane.xlu0 %108
    %v110 = vsub.f32 %v103, %v109
    %v111 = vmul.f32 %v110, 1.442695
    %v112 = vpow.pop %v111
    %v113 = vsel %vm106, %v112, 0.0
    %114 = vadd.xlane.f32.xlu0 %v113
    %v115 = vpop.xlane.xlu0 %114
    %v116 = vrcp.pop %v115
    %v117 = vmul.f32 %v112, %v116
    %v118 = vsub.f32 0.0, %v103
    %v119 = vmul.f32 %v118, 1.442695
    %v120 = vpow.pop %v119
    %v121 = vadd.f32 %v120, 1.0
    %v122 = vrcp.pop %v121
    %v123 = vtanh.pop %v103
    %124 = vst.msk [vmem:[#allocation2] sm:$0x3] %vm106, %v117
    %v125 = vld [vmem:[%s1] sm:$0xff]
    %v126 = vld [vmem:[%s1 + $0x8] sm:$0xff]
    %v127 = vld [vmem:[%s1 + $0x10] sm:$0xff]
    %v128 = vld [vmem:[%s1 + $0x18] sm:$0xff]
    %v129 = vlaneseq
    %v130 = vshrl.u32 %v129, 7
    %v131 = vsub.s32 0, %v130
    %v132 = vrot.slane %v117, %v131
    %134 = vbcast.lane.b32.xlu0 %v132, 256
    %v135 = vpop.permute.xlu0 %134
    %s137 = sor.u32 256, 8
    %138 = vbcast.lane.b32.xlu0 %v132, %s137
    %v139 = vpop.permute.xlu0 %138
    %v140 = vlaneseq
    %v141 = vshrl.u32 %v140, 7
    %v142 = vsub.s32 1, %v141
    %v143 = vrot.slane %v117, %v142
    %145 = vbcast.lane.b32.xlu0 %v143, 256
    %v146 = vpop.permute.xlu0 %145
    %s148 = sor.u32 256, 8
    %149 = vbcast.lane.b32.xlu0 %v143, %s148
    %v150 = vpop.permute.xlu0 %149
    %v153 = vunpack.c.l.s4 1966171168
    %v154 = vunpack.c.0.s8 %v153
    %v155 = vlaneseq
    %v156 = vshrl.u32 %v155, 7
    %v157 = vsub.s32 %v154, %v156
    %v158 = vrot.slane %v122, %v157
    %v159 = vcombine.high %v158, %v158
    %v161 = vunpack.c.l.s4 1966171168
    %v162 = vunpack.c.0.s8 %v161
    %v163 = vlaneseq
    %v164 = vshrl.u32 %v163, 7
    %v165 = vsub.s32 %v162, %v164
    %v166 = vrot.slane %v158, %v165
    %v168 = vunpack.c.l.s4 1966171168
    %v169 = vunpack.c.0.s8 %v168
    %v170 = vlaneseq
    %v171 = vshrl.u32 %v170, 7
    %v172 = vsub.s32 %v169, %v171
    %v173 = vrot.slane %v159, %v172
    %v174 = vlaneseq
    %v175 = vshrl.u32 %v174, 7
    %v176 = vsub.s32 0, %v175
    %v177 = vrot.slane %v166, %v176
    %v178 = vlaneseq
    %v179 = vshrl.u32 %v178, 7
    %v180 = vsub.s32 0, %v179
    %v181 = vrot.slane %v173, %v180
    %v184 = vmul.f32 %v135, %v177
    %v185 = vmul.f32 %v139, %v177
    %v186 = vmul.f32 %v146, %v181
    %v187 = vmul.f32 %v150, %v181
    %v188 = vsub.f32 1.0, %v184
    %v189 = vsub.f32 1.0, %v185
    %v190 = vsub.f32 1.0, %v186
    %v191 = vsub.f32 1.0, %v187
    %196 = vrot.lane.b32.xlu0 %v188, 112
    %v197 = vpop.permute.xlu0 %196
    %198 = vrot.lane.b32.xlu0 %v189, 112
    %v199 = vpop.permute.xlu0 %198
    %200 = vrot.lane.b32.xlu0 %v190, 112
    %v201 = vpop.permute.xlu0 %200
    %202 = vrot.lane.b32.xlu0 %v191, 112
    %v203 = vpop.permute.xlu0 %202
    %v208 = vmul.f32 %v125, %v197
    %v209 = vmul.f32 %v126, %v199
    %v210 = vmul.f32 %v127, %v201
    %v211 = vmul.f32 %v128, %v203
    %v214 = vunpack.c.l.s4 1966171168
    %v215 = vunpack.c.0.s8 %v214
    %v216 = vlaneseq
    %v217 = vshrl.u32 %v216, 7
    %v218 = vsub.s32 %v215, %v217
    %v219 = vrot.slane %v123, %v218
    %v220 = vcombine.high %v219, %v219
    %v222 = vunpack.c.l.s4 1966171168
    %v223 = vunpack.c.0.s8 %v222
    %v224 = vlaneseq
    %v225 = vshrl.u32 %v224, 7
    %v226 = vsub.s32 %v223, %v225
    %v227 = vrot.slane %v219, %v226
    %v229 = vunpack.c.l.s4 1966171168
    %v230 = vunpack.c.0.s8 %v229
    %v231 = vlaneseq
    %v232 = vshrl.u32 %v231, 7
    %v233 = vsub.s32 %v230, %v232
    %v234 = vrot.slane %v220, %v233
    %v235 = vlaneseq
    %v236 = vshrl.u32 %v235, 7
    %v237 = vsub.s32 0, %v236
    %v238 = vrot.slane %v227, %v237
    %v239 = vlaneseq
    %v240 = vshrl.u32 %v239, 7
    %v241 = vsub.s32 0, %v240
    %v242 = vrot.slane %v234, %v241
    %v245 = vmul.f32 %v135, %v238
    %v246 = vmul.f32 %v139, %v238
    %v247 = vmul.f32 %v146, %v242
    %v248 = vmul.f32 %v150, %v242
    %253 = vrot.lane.b32.xlu0 %v245, 104
    %v254 = vpop.permute.xlu0 %253
    %255 = vrot.lane.b32.xlu0 %v246, 104
    %v256 = vpop.permute.xlu0 %255
    %257 = vrot.lane.b32.xlu0 %v247, 104
    %v258 = vpop.permute.xlu0 %257
    %259 = vrot.lane.b32.xlu0 %v248, 104
    %v260 = vpop.permute.xlu0 %259
    %v265 = vadd.f32 %v208, %v254
    %v266 = vadd.f32 %v209, %v256
    %v267 = vadd.f32 %v210, %v258
    %v268 = vadd.f32 %v211, %v260
    %vm269 = vcmask 64512
    %270 = vst.msk [vmem:[%s4] sm:$0xff] %vm269, %v265
    %271 = vst.msk [vmem:[%s4 + $0x8] sm:$0xff] %vm269, %v266
    %272 = vst.msk [vmem:[%s4 + $0x10] sm:$0xff] %vm269, %v267
    %273 = vst.msk [vmem:[%s4 + $0x18] sm:$0xff] %vm269, %v268
    // Predicated region
    $region18: #{write_head_forward.1} parent=1 // pred_check
      _
    $region19: #{write_head_forward.1} parent=1 // pred_check_branch
      %275 = sbr.rel (0) target = $region21
    $region20: #{write_head_forward.1} parent=1 // pred_region
      _
    $region21: #{write_head_forward.1} parent=1 // pred_fallthru
      _
    // Predicated region
    $region22: #{write_head_forward.1} parent=1 // pred_check
      _
    $region23: #{write_head_forward.1} parent=1 // pred_check_branch
      %277 = sbr.rel (0) target = $region25
    $region24: #{write_head_forward.1} parent=1 // pred_region
      %s279 = ssub.s32 32, 32
      %280 = vsyncadd [#allocation3], %s279
      %s282 = sshll.u32 [#allocation2], 4
      %s283 = int_to_ptr.vmem [resolvable:$true] %s282
      %285 = dma.vmem_to_hbm [thread:$0]  %s283, 32, %s5, [#allocation3]
    $region25: #{write_head_forward.1} parent=1 // pred_fallthru
      _
    // Predicated region
    $region26: #{write_head_forward.1} parent=1 // pred_check
      _
    $region27: #{write_head_forward.1} parent=1 // pred_check_branch
      %287 = sbr.rel (0) target = $region29
    $region28: #{write_head_forward.1} parent=1 // pred_region
      _
    $region29: #{write_head_forward.1} parent=1 // pred_fallthru
      _
    // Predicated region
    $region30: #{write_head_forward.1} parent=1 // pred_check
      _
    $region31: #{write_head_forward.1} parent=1 // pred_check_branch
      %289 = sbr.rel (0) target = $region33
    $region32: #{write_head_forward.1} parent=1 // pred_region
      %290 = dma.done [#allocation3], 32
    $region33: #{write_head_forward.1} parent=1 // pred_fallthru
      _
    %291 = vsyncpa [#allocation3], 1

</llo_original>
